<compile_context>
chip_gen: v5e
topology: v5e:2x2
jax: 0.10.0
libtpu: 0.0.40
codegen_flags: <defaults>
</compile_context>

<pallas_src>
import functools

import jax
import jax.numpy as jnp
from jax import lax
from jax.experimental import pallas as pl
from jax.experimental.pallas import tpu as pltpu


def _ma_layer_kernel(x_ref, w1_ref, b1_ref, w2_ref, b2_ref, out_ref, acc_ref,
                     *, hw_total, tile_hw, ragged_hw):
    # x_ref:  [tile_b, C, tile_hw]  (native dtype; one HW chunk of the stream)
    # w1_ref: [C, hidden], b1_ref: [1, hidden]
    # w2_ref: [hidden, out_dim], b2_ref: [1, out_dim]
    # out_ref:[tile_b, out_dim]
    # acc_ref:[tile_b, C] f32 running spatial sum (persists across HW chunks)
    hw_i = pl.program_id(1)

    @pl.when(hw_i == 0)
    def _init():
        acc_ref[...] = jnp.zeros_like(acc_ref)

    xf = x_ref[...].astype(jnp.float32)
    if ragged_hw:
        # Mask out the padded tail of the last HW chunk so the mean is unbiased.
        col = hw_i * tile_hw + lax.broadcasted_iota(jnp.int32, xf.shape, 2)
        xf = jnp.where(col < hw_total, xf, 0.0)
    acc_ref[...] += jnp.sum(xf, axis=-1)

    @pl.when(hw_i == pl.num_programs(1) - 1)
    def _epilogue():
        # Spatial mean, then the two tiny FCs (negligible vs the HBM stream).
        y = acc_ref[...] * (1.0 / float(hw_total))              # [tile_b, C]
        h = jnp.dot(y, w1_ref[...].astype(jnp.float32),
                    preferred_element_type=jnp.float32)
        h = jnp.maximum(h + b1_ref[...].astype(jnp.float32), 0.0)   # ca_fc1 + ReLU
        o = jnp.dot(h, w2_ref[...].astype(jnp.float32),
                    preferred_element_type=jnp.float32)
        o = o + b2_ref[...].astype(jnp.float32)                      # ca_fc2
        out_ref[...] = o.astype(out_ref.dtype)


@functools.partial(jax.jit,
                   static_argnames=("num_conv", "k", "tile_b", "tile_hw"))
def ma_layer_forward(x, w1, b1, w2, b2, *, num_conv=6, k=1,
                     tile_b=None, tile_hw=None):
    """x: [B, C, H, W] (NCHW, as in PyTorch). Returns [B, k, num_conv]."""
    B, C, H, W = x.shape
    HW = H * W
    hidden = w1.shape[1]          # 2 * (k * num_conv)
    out_dim = w2.shape[1]         # k * num_conv

    # --- tile selection (respect the (8,128) last-two-dims rule) -----------
    # Batch tile: full B if small, else a multiple of 8.
    if tile_b is None:
        tile_b = 256
    if B <= tile_b:
        tile_b = B
    elif tile_b % 8 != 0:
        tile_b = max(8, (tile_b // 8) * 8)

    # HW chunk: multiple of 128 (or the full HW when it is small).
    if tile_hw is None:
        tile_hw = 1024
    if HW <= tile_hw or HW < 128:
        tile_hw = HW
    else:
        tile_hw = max(128, (min(tile_hw, HW) // 128) * 128)

    grid = (pl.cdiv(B, tile_b), pl.cdiv(HW, tile_hw))
    ragged_hw = (HW % tile_hw) != 0

    x3 = x.reshape(B, C, HW)
    b1_2d = b1.reshape(1, hidden)
    b2_2d = b2.reshape(1, out_dim)

    kernel = functools.partial(_ma_layer_kernel, hw_total=HW,
                               tile_hw=tile_hw, ragged_hw=ragged_hw)

    out = pl.pallas_call(
        kernel,
        out_shape=jax.ShapeDtypeStruct((B, out_dim), jnp.float32),
        grid_spec=pltpu.PrefetchScalarGridSpec(
            num_scalar_prefetch=0,
            grid=grid,
            in_specs=[
                # Streamed activation tile: (batch-tile, all channels, HW chunk)
                pl.BlockSpec((tile_b, C, tile_hw), lambda b, h: (b, 0, h)),
                # Tiny weights/biases: constant block index -> fetched once.
                pl.BlockSpec((C, hidden), lambda b, h: (0, 0)),
                pl.BlockSpec((1, hidden), lambda b, h: (0, 0)),
                pl.BlockSpec((hidden, out_dim), lambda b, h: (0, 0)),
                pl.BlockSpec((1, out_dim), lambda b, h: (0, 0)),
            ],
            out_specs=pl.BlockSpec((tile_b, out_dim), lambda b, h: (b, 0)),
            scratch_shapes=[pltpu.VMEM((tile_b, C), jnp.float32)],
        ),
        compiler_params=pltpu.CompilerParams(
            dimension_semantics=("parallel", "arbitrary"),
            vmem_limit_bytes=32 * 1024 * 1024),
    )(x3, w1, b1_2d, w2, b2_2d)

    # y.view(-1, k, num_conv)
    return out.reshape(B, k, num_conv)


def init_ma_layer_params(key, channel=6, num_conv=6, k=1):
    """Deterministic synthetic parameters matching the PyTorch module shapes.

    fc1: Linear(channel, 2*k*num_conv); fc2: Linear(2*k*num_conv, k*num_conv).
    Stored here as [in, out] (i.e. transposed vs torch's [out, in]).
    """
    output = k * num_conv
    k1, k2, k3, k4 = jax.random.split(key, 4)
    bound1 = 1.0 / jnp.sqrt(channel)
    bound2 = 1.0 / jnp.sqrt(2 * output)
    w1 = jax.random.uniform(k1, (channel, 2 * output), jnp.float32,
                            -bound1, bound1)
    b1 = jax.random.uniform(k2, (2 * output,), jnp.float32, -bound1, bound1)
    w2 = jax.random.uniform(k3, (2 * output, output), jnp.float32,
                            -bound2, bound2)
    b2 = jax.random.uniform(k4, (output,), jnp.float32, -bound2, bound2)
    return w1, b1, w2, b2


def ma_layer_ref(x, w1, b1, w2, b2, num_conv=6, k=1):
    """Pure-JAX reference of the PyTorch forward for verification."""
    B = x.shape[0]
    y = jnp.mean(x.astype(jnp.float32), axis=(2, 3))   # avg_pool(1) + view
    y = jnp.maximum(y @ w1 + b1, 0.0)                  # ca_fc1
    y = y @ w2 + b2                                    # ca_fc2
    return y.reshape(B, k, num_conv)


if __name__ == "__main__":
    num_conv, channel, k = 6, 6, 1
    key = jax.random.PRNGKey(0)
    kx1, kx2, kp = jax.random.split(key, 3)
    w1, b1, w2, b2 = init_ma_layer_params(kp, channel, num_conv, k)

    # Case 1: aligned HW, multiple HW chunks (exercises the accumulator path).
    B1, H1, W1 = 2, 16, 16
    x1 = jax.random.normal(kx1, (B1, channel, H1, W1), dtype=jnp.float32)
    out1 = ma_layer_forward(x1, w1, b1, w2, b2, num_conv=num_conv, k=k,
                            tile_hw=128)
    out1 = jax.block_until_ready(out1)
    ref1 = ma_layer_ref(x1, w1, b1, w2, b2, num_conv=num_conv, k=k)
    assert out1.shape == (B1, k, num_conv), out1.shape
    assert jnp.allclose(out1, ref1, atol=1e-5, rtol=1e-5), "case1 mismatch"

    # Case 2: ragged last HW chunk (exercises the masked-tail path).
    B2, H2, W2 = 3, 10, 20   # HW = 200, tile_hw = 128 -> last chunk is partial
    x2 = jax.random.normal(kx2, (B2, channel, H2, W2), dtype=jnp.float32)
    out2 = ma_layer_forward(x2, w1, b1, w2, b2, num_conv=num_conv, k=k,
                            tile_hw=128)
    out2 = jax.block_until_ready(out2)
    ref2 = ma_layer_ref(x2, w1, b1, w2, b2, num_conv=num_conv, k=k)
    assert out2.shape == (B2, k, num_conv), out2.shape
    assert jnp.allclose(out2, ref2, atol=1e-5, rtol=1e-5), "case2 mismatch"

    print("KERNEL_OK")
</pallas_src>

<mosaic_0001>
module attributes {stable_mosaic.version = 11 : i64} {
  func.func @_ma_layer_kernel(%arg0: i32, %arg1: i32, %arg2: memref<2x6x128xf32, #tpu.memory_space<vmem>>, %arg3: memref<6x12xf32, #tpu.memory_space<vmem>>, %arg4: memref<1x12xf32, #tpu.memory_space<vmem>>, %arg5: memref<12x6xf32, #tpu.memory_space<vmem>>, %arg6: memref<1x6xf32, #tpu.memory_space<vmem>>, %arg7: memref<2x6xf32, #tpu.memory_space<vmem>>, %arg8: memref<2x6xf32, #tpu.memory_space<vmem>>) attributes {dimension_semantics = [#tpu.dimension_semantics<parallel>, #tpu.dimension_semantics<arbitrary>], iteration_bounds = array<i64: 1, 2>, scalar_prefetch = 0 : i64, scratch_operands = 1 : i64, tpu.core_type = #tpu.core_type<tc>, window_params = [{transform_indices = @transform_0, window_bounds = array<i64: 2, 6, 128>}, {pipeline_mode = #tpu.pipeline_mode<synchronous>, transform_indices = @transform_1, window_bounds = array<i64: 6, 12>}, {pipeline_mode = #tpu.pipeline_mode<synchronous>, transform_indices = @transform_2, window_bounds = array<i64: 1, 12>}, {pipeline_mode = #tpu.pipeline_mode<synchronous>, transform_indices = @transform_3, window_bounds = array<i64: 12, 6>}, {pipeline_mode = #tpu.pipeline_mode<synchronous>, transform_indices = @transform_4, window_bounds = array<i64: 1, 6>}, {transform_indices = @transform_5, window_bounds = array<i64: 2, 6>}]} {
    %c0_i32 = arith.constant 0 : i32
    %0 = arith.cmpi eq, %arg1, %c0_i32 : i32
    %1 = arith.extui %0 : i1 to i32
    %c0_i32_0 = arith.constant 0 : i32
    %2 = arith.cmpi ne, %1, %c0_i32_0 : i32
    scf.if %2 {
      %cst_8 = arith.constant 0.000000e+00 : f32
      %11 = vector.broadcast %cst_8 : f32 to vector<2x6xf32>
      %c0_9 = arith.constant 0 : index
      %c0_10 = arith.constant 0 : index
      %12 = vector.load %arg8[%c0_9, %c0_10] : memref<2x6xf32, #tpu.memory_space<vmem>>, vector<2x6xf32>
      tpu.vector_store %arg8[%c0_9, %c0_10], %11 {strides = array<i32>} : memref<2x6xf32, #tpu.memory_space<vmem>>, vector<2x6xf32>,
    } else {
    }
    %c0 = arith.constant 0 : index
    %c0_1 = arith.constant 0 : index
    %c0_2 = arith.constant 0 : index
    %3 = vector.load %arg2[%c0, %c0_1, %c0_2] : memref<2x6x128xf32, #tpu.memory_space<vmem>>, vector<2x6x128xf32>
    %c0_3 = arith.constant 0 : index
    %c0_4 = arith.constant 0 : index
    %4 = vector.load %arg8[%c0_3, %c0_4] : memref<2x6xf32, #tpu.memory_space<vmem>>, vector<2x6xf32>
    %cst = arith.constant dense<0.000000e+00> : vector<2x6xf32>
    %5 = vector.multi_reduction <add>, %3, %cst [2] : vector<2x6x128xf32> to vector<2x6xf32>
    %6 = arith.addf %4, %5 : vector<2x6xf32>
    %c0_5 = arith.constant 0 : index
    %c0_6 = arith.constant 0 : index
    %7 = vector.load %arg8[%c0_5, %c0_6] : memref<2x6xf32, #tpu.memory_space<vmem>>, vector<2x6xf32>
    tpu.vector_store %arg8[%c0_5, %c0_6], %6 {strides = array<i32>} : memref<2x6xf32, #tpu.memory_space<vmem>>, vector<2x6xf32>,
    %c1_i32 = arith.constant 1 : i32
    %8 = arith.cmpi eq, %arg1, %c1_i32 : i32
    %9 = arith.extui %8 : i1 to i32
    %c0_i32_7 = arith.constant 0 : i32
    %10 = arith.cmpi ne, %9, %c0_i32_7 : i32
    scf.if %10 {
      %c0_8 = arith.constant 0 : index
      %c0_9 = arith.constant 0 : index
      %11 = vector.load %arg8[%c0_8, %c0_9] : memref<2x6xf32, #tpu.memory_space<vmem>>, vector<2x6xf32>
      %cst_10 = arith.constant 3.906250e-03 : f32
      %12 = vector.broadcast %cst_10 : f32 to vector<2x6xf32>
      %13 = arith.mulf %11, %12 : vector<2x6xf32>
      %c0_11 = arith.constant 0 : index
      %c0_12 = arith.constant 0 : index
      %14 = vector.load %arg3[%c0_11, %c0_12] : memref<6x12xf32, #tpu.memory_space<vmem>>, vector<6x12xf32>
      %cst_13 = arith.constant dense<0.000000e+00> : vector<2x12xf32>
      %15 = tpu.matmul %13, %14, %cst_13 {dimension_numbers = #tpu.dot_dimension_numbers<[1], [0], [0], [1], [0, 0, 1, 1], [], []>} : vector<2x6xf32>, vector<6x12xf32>, vector<2x12xf32> -> vector<2x12xf32>
      %c0_14 = arith.constant 0 : index
      %c0_15 = arith.constant 0 : index
      %16 = vector.load %arg4[%c0_14, %c0_15] : memref<1x12xf32, #tpu.memory_space<vmem>>, vector<1x12xf32>
      %17 = vector.broadcast %16 : vector<1x12xf32> to vector<2x12xf32>
      %18 = arith.addf %15, %17 : vector<2x12xf32>
      %cst_16 = arith.constant 0.000000e+00 : f32
      %19 = vector.broadcast %cst_16 : f32 to vector<2x12xf32>
      %20 = arith.maximumf %18, %19 : vector<2x12xf32>
      %c0_17 = arith.constant 0 : index
      %c0_18 = arith.constant 0 : index
      %21 = vector.load %arg5[%c0_17, %c0_18] : memref<12x6xf32, #tpu.memory_space<vmem>>, vector<12x6xf32>
      %cst_19 = arith.constant dense<0.000000e+00> : vector<2x6xf32>
      %22 = tpu.matmul %20, %21, %cst_19 {dimension_numbers = #tpu.dot_dimension_numbers<[1], [0], [0], [1], [0, 0, 1, 1], [], []>} : vector<2x12xf32>, vector<12x6xf32>, vector<2x6xf32> -> vector<2x6xf32>
      %c0_20 = arith.constant 0 : index
      %c0_21 = arith.constant 0 : index
      %23 = vector.load %arg6[%c0_20, %c0_21] : memref<1x6xf32, #tpu.memory_space<vmem>>, vector<1x6xf32>
      %24 = vector.broadcast %23 : vector<1x6xf32> to vector<2x6xf32>
      %25 = arith.addf %22, %24 : vector<2x6xf32>
      %c0_22 = arith.constant 0 : index
      %c0_23 = arith.constant 0 : index
      %26 = vector.load %arg7[%c0_22, %c0_23] : memref<2x6xf32, #tpu.memory_space<vmem>>, vector<2x6xf32>
      tpu.vector_store %arg7[%c0_22, %c0_23], %25 {strides = array<i32>} : memref<2x6xf32, #tpu.memory_space<vmem>>, vector<2x6xf32>,
    } else {
    }
    return
  }
  func.func @transform_0(%arg0: i32, %arg1: i32) -> (i32, i32, i32) {
    %c0_i32 = arith.constant 0 : i32
    %c0_i32_0 = arith.constant 0 : i32
    return %arg0, %c0_i32, %arg1 : i32, i32, i32
  }
  func.func @transform_1(%arg0: i32, %arg1: i32) -> (i32, i32) {
    %c0_i32 = arith.constant 0 : i32
    %c0_i32_0 = arith.constant 0 : i32
    %c0_i32_1 = arith.constant 0 : i32
    return %c0_i32, %c0_i32_0 : i32, i32
  }
  func.func @transform_2(%arg0: i32, %arg1: i32) -> (i32, i32) {
    %c0_i32 = arith.constant 0 : i32
    %c0_i32_0 = arith.constant 0 : i32
    %c0_i32_1 = arith.constant 0 : i32
    return %c0_i32, %c0_i32_0 : i32, i32
  }
  func.func @transform_3(%arg0: i32, %arg1: i32) -> (i32, i32) {
    %c0_i32 = arith.constant 0 : i32
    %c0_i32_0 = arith.constant 0 : i32
    %c0_i32_1 = arith.constant 0 : i32
    return %c0_i32, %c0_i32_0 : i32, i32
  }
  func.func @transform_4(%arg0: i32, %arg1: i32) -> (i32, i32) {
    %c0_i32 = arith.constant 0 : i32
    %c0_i32_0 = arith.constant 0 : i32
    %c0_i32_1 = arith.constant 0 : i32
    return %c0_i32, %c0_i32_0 : i32, i32
  }
  func.func @transform_5(%arg0: i32, %arg1: i32) -> (i32, i32) {
    %c0_i32 = arith.constant 0 : i32
    %c0_i32_0 = arith.constant 0 : i32
    return %arg0, %c0_i32 : i32, i32
  }
}

</mosaic_0001>

<llo_original>
// kernel: ma_layer_forward.1
$region0: #{ma_layer_forward.1}
  #allocation0 [shape = 'u32[]', space=smem, size = 0x4, offset = 0x4, fixed_abs, tag = 'smem constant byte address 0x4 - core index']
  #allocation1 [shape = 'u32[72,128]{1,0:T(1,128)}', space=vmem, size = 0x9000, scoped, tag = 'internal scratch']
  #allocation2 [shape = 'f32[2,6]{1,0:T(2,128)}', space=vmem, size = 0x400, scoped, tag = 'scratch operand']
  %s0 = inlined_call_operand.vmem [shape: f32[2,6,256], index: 0, kind: input, shape index: {}]
  %s1 = inlined_call_operand.vmem [shape: f32[6,12], index: 1, kind: input, shape index: {}]
  %s2 = inlined_call_operand.vmem [shape: f32[1,12], index: 2, kind: input, shape index: {}]
  %s3 = inlined_call_operand.vmem [shape: f32[12,6], index: 3, kind: input, shape index: {}]
  %s4 = inlined_call_operand.vmem [shape: f32[1,6], index: 4, kind: input, shape index: {}]
  %s5 = inlined_call_operand.hbm [shape: f32[2,6], index: 5, kind: output, shape index: {}]
  %s6 = sld [smem:[#allocation0]]
  $region99: #{ma_layer_forward.1} parent=0
    _
  %s8 = ssub.s32 1, %s6
  %s9 = scalar_select 0, %s8, %s6
  $region1: #{ma_layer_forward.1} parent=0
    #allocation3 [shape = 'u8[16384]{0}', space=vmem, size = 0x4000, scoped, tag = 'input window, operand 0']
    #allocation4 [shape = 'u8[1024]{0}', space=vmem, size = 0x400, scoped, tag = 'output window, operand 0, single buffered']
    #allocation5 [shape = 's32[2]{0}', space=sflag, size = 0x8, scoped, tag = 'scoped memory for ma_layer_forward.1']
    %10 = vsyncpa [#allocation5], 0
    loop: start=0, step=1, limit=4
    $region2: #{ma_layer_forward.1} parent=1 // loop_pre_header
      _
    $region3: #{ma_layer_forward.1} parent=1 // loop_header
      %s12 = sphi 0, %s16
      %p13 = scmp.ge.s32.totalorder %s12, 4
      %s19 = sphi 0, %s31
      %s20 = sphi 0, %s27
      %s21 = sphi 0, %s19
      %s22 = sphi 0, %s20
      %s23 = sphi 0, %s21
      %s24 = sphi 0, %s22
      %s36 = sphi 0, %s38
      %s39 = sphi 0, %s36
      %s40 = sphi 0, %s39
      %s56 = sphi 0, %s40
      %s60 = sphi 0, %s60
      %s62 = sphi 0, %s60
      %s63 = sphi 0, %s62
      %s77 = sphi 0, %s63
      %s81 = sphi 0, %s81
      %s83 = sphi 0, %s81
      %s84 = sphi 0, %s83
      %s98 = sphi 0, %s84
      %s102 = sphi 0, %s102
      %s104 = sphi 0, %s102
      %s105 = sphi 0, %s104
      %s119 = sphi 0, %s105
      %s123 = sphi 0, %s123
      %s125 = sphi 0, %s123
      %s126 = sphi 0, %s125
      %s140 = sphi 0, %s126
      %s146 = sphi 0, %s148
      %s149 = sphi 0, %s146
      %s150 = sphi 0, %s149
      %s166 = sphi 0, %s150
    $region4: #{ma_layer_forward.1} parent=1 // loop_header_branch
      %15 = sbr.rel (%p13) target = $region8
    $region5: #{ma_layer_forward.1} parent=1 // loop_body
      %s17 = ssub.s32 %s12, 1
      %s18 = ssub.s32 %s12, 2
      %s25 = sadd.s32 1, %s20
      %p26 = scmp.ge.s32.totalorder %s25, 2
      %s27 = scalar_select %p26, 0, %s25
      %s28 = sadd.s32 1, %s19
      %s29 = scalar_select %p26, %s28, %s19
      %p30 = scmp.ge.s32.totalorder %s29, 1
      %s31 = scalar_select %p30, 0, %s29
      %s32 = ssub.s32 %s19, %s31
      %s33 = ssub.s32 %s20, %s27
      %s34 = sor.u32 %s32, %s33
      %p35 = scmp.eq.s32.totalorder %s34, 0
      %s37 = sadd.s32 %s36, 1
      %s38 = scalar_select %p35, %s36, %s37
      %p41 = pneg %p35
      %p42 = scmp.eq.s32.totalorder %s12, 1
      %p43 = por %p41, %p42
      %p44 = scmp.ne.s32.totalorder %s36, %s39
      %p45 = scmp.eq.s32.totalorder %s12, 0
      %p46 = por %p44, %p45
      %p47 = scmp.ne.s32.totalorder %s36, %s39
      %p48 = scmp.eq.s32.totalorder %s17, 1
      %p49 = por %p47, %p48
      %p50 = scmp.ne.s32.totalorder %s39, %s40
      %p51 = scmp.eq.s32.totalorder %s17, 0
      %p52 = por %p50, %p51
      %p53 = scmp.ne.s32.totalorder %s39, %s40
      %p54 = scmp.eq.s32.totalorder %s18, 1
      %p55 = por %p53, %p54
      %p57 = scmp.ne.s32.totalorder %s40, %s56
      %p58 = scmp.eq.s32.totalorder %s18, 0
      %p59 = por %p57, %p58
      %s61 = sadd.s32 %s60, 1
      %p64 = scmp.eq.s32.totalorder %s12, 1
      %p65 = scmp.ne.s32.totalorder %s60, %s62
      %p66 = scmp.eq.s32.totalorder %s12, 0
      %p67 = por %p65, %p66
      %p68 = scmp.ne.s32.totalorder %s60, %s62
      %p69 = scmp.eq.s32.totalorder %s17, 1
      %p70 = por %p68, %p69
      %p71 = scmp.ne.s32.totalorder %s62, %s63
      %p72 = scmp.eq.s32.totalorder %s17, 0
      %p73 = por %p71, %p72
      %p74 = scmp.ne.s32.totalorder %s62, %s63
      %p75 = scmp.eq.s32.totalorder %s18, 1
      %p76 = por %p74, %p75
      %p78 = scmp.ne.s32.totalorder %s63, %s77
      %p79 = scmp.eq.s32.totalorder %s18, 0
      %p80 = por %p78, %p79
      %s82 = sadd.s32 %s81, 1
      %p85 = scmp.eq.s32.totalorder %s12, 1
      %p86 = scmp.ne.s32.totalorder %s81, %s83
      %p87 = scmp.eq.s32.totalorder %s12, 0
      %p88 = por %p86, %p87
      %p89 = scmp.ne.s32.totalorder %s81, %s83
      %p90 = scmp.eq.s32.totalorder %s17, 1
      %p91 = por %p89, %p90
      %p92 = scmp.ne.s32.totalorder %s83, %s84
      %p93 = scmp.eq.s32.totalorder %s17, 0
      %p94 = por %p92, %p93
      %p95 = scmp.ne.s32.totalorder %s83, %s84
      %p96 = scmp.eq.s32.totalorder %s18, 1
      %p97 = por %p95, %p96
      %p99 = scmp.ne.s32.totalorder %s84, %s98
      %p100 = scmp.eq.s32.totalorder %s18, 0
      %p101 = por %p99, %p100
      %s103 = sadd.s32 %s102, 1
      %p106 = scmp.eq.s32.totalorder %s12, 1
      %p107 = scmp.ne.s32.totalorder %s102, %s104
      %p108 = scmp.eq.s32.totalorder %s12, 0
      %p109 = por %p107, %p108
      %p110 = scmp.ne.s32.totalorder %s102, %s104
      %p111 = scmp.eq.s32.totalorder %s17, 1
      %p112 = por %p110, %p111
      %p113 = scmp.ne.s32.totalorder %s104, %s105
      %p114 = scmp.eq.s32.totalorder %s17, 0
      %p115 = por %p113, %p114
      %p116 = scmp.ne.s32.totalorder %s104, %s105
      %p117 = scmp.eq.s32.totalorder %s18, 1
      %p118 = por %p116, %p117
      %p120 = scmp.ne.s32.totalorder %s105, %s119
      %p121 = scmp.eq.s32.totalorder %s18, 0
      %p122 = por %p120, %p121
      %s124 = sadd.s32 %s123, 1
      %p127 = scmp.eq.s32.totalorder %s12, 1
      %p128 = scmp.ne.s32.totalorder %s123, %s125
      %p129 = scmp.eq.s32.totalorder %s12, 0
      %p130 = por %p128, %p129
      %p131 = scmp.ne.s32.totalorder %s123, %s125
      %p132 = scmp.eq.s32.totalorder %s17, 1
      %p133 = por %p131, %p132
      %p134 = scmp.ne.s32.totalorder %s125, %s126
      %p135 = scmp.eq.s32.totalorder %s17, 0
      %p136 = por %p134, %p135
      %p137 = scmp.ne.s32.totalorder %s125, %s126
      %p138 = scmp.eq.s32.totalorder %s18, 1
      %p139 = por %p137, %p138
      %p141 = scmp.ne.s32.totalorder %s126, %s140
      %p142 = scmp.eq.s32.totalorder %s18, 0
      %p143 = por %p141, %p142
      %s144 = ssub.s32 %s19, %s31
      %p145 = scmp.eq.s32.totalorder %s144, 0
      %s147 = sadd.s32 %s146, 1
      %s148 = scalar_select %p145, %s146, %s147
      %p151 = pneg %p145
      %p152 = scmp.eq.s32.totalorder %s12, 1
      %p153 = por %p151, %p152
      %p154 = scmp.ne.s32.totalorder %s146, %s149
      %p155 = scmp.eq.s32.totalorder %s12, 0
      %p156 = por %p154, %p155
      %p157 = scmp.ne.s32.totalorder %s146, %s149
      %p158 = scmp.eq.s32.totalorder %s17, 1
      %p159 = por %p157, %p158
      %p160 = scmp.ne.s32.totalorder %s149, %s150
      %p161 = scmp.eq.s32.totalorder %s17, 0
      %p162 = por %p160, %p161
      %p163 = scmp.ne.s32.totalorder %s149, %s150
      %p164 = scmp.eq.s32.totalorder %s18, 1
      %p165 = por %p163, %p164
      %p167 = scmp.ne.s32.totalorder %s150, %s166
      %p168 = scmp.eq.s32.totalorder %s18, 0
      %p169 = por %p167, %p168
      %p170 = scmp.le.s32.totalorder 1, %s12
      %p171 = scmp.lt.s32.totalorder %s12, 3
      %p172 = pnand %p170, %p171
      %p173 = pneg %p172
      // Predicated region
      $region9: #{ma_layer_forward.1} parent=5 // pred_check
        _
      $region10: #{ma_layer_forward.1} parent=5 // pred_check_branch
        %175 = sbr.rel (%p172) target = $region12
      $region11: #{ma_layer_forward.1} parent=5 // pred_region
        %s176 = ssub.s32 %s12, 1
        // Predicated region
        $region13: #{ma_layer_forward.1} parent=11 // pred_check
          %p177 = pneg %p73
        $region14: #{ma_layer_forward.1} parent=11 // pred_check_branch
          %179 = sbr.rel (%p177) target = $region16
        $region15: #{ma_layer_forward.1} parent=11 // pred_region
          _
        $region16: #{ma_layer_forward.1} parent=11 // pred_fallthru
          _
        // Predicated region
        $region17: #{ma_layer_forward.1} parent=11 // pred_check
          %p180 = pneg %p94
        $region18: #{ma_layer_forward.1} parent=11 // pred_check_branch
          %182 = sbr.rel (%p180) target = $region20
        $region19: #{ma_layer_forward.1} parent=11 // pred_region
          _
        $region20: #{ma_layer_forward.1} parent=11 // pred_fallthru
          _
        // Predicated region
        $region21: #{ma_layer_forward.1} parent=11 // pred_check
          %p183 = pneg %p115
        $region22: #{ma_layer_forward.1} parent=11 // pred_check_branch
          %185 = sbr.rel (%p183) target = $region24
        $region23: #{ma_layer_forward.1} parent=11 // pred_region
          _
        $region24: #{ma_layer_forward.1} parent=11 // pred_fallthru
          _
        // Predicated region
        $region25: #{ma_layer_forward.1} parent=11 // pred_check
          %p186 = pneg %p136
        $region26: #{ma_layer_forward.1} parent=11 // pred_check_branch
          %188 = sbr.rel (%p186) target = $region28
        $region27: #{ma_layer_forward.1} parent=11 // pred_region
          _
        $region28: #{ma_layer_forward.1} parent=11 // pred_fallthru
          _
      $region12: #{ma_layer_forward.1} parent=5 // pred_fallthru
        _
      %p189 = scmp.lt.s32.totalorder %s12, 2
      // Predicated region
      $region29: #{ma_layer_forward.1} parent=5 // pred_check
        %p190 = pneg %p189
      $region30: #{ma_layer_forward.1} parent=5 // pred_check_branch
        %192 = sbr.rel (%p190) target = $region32
      $region31: #{ma_layer_forward.1} parent=5 // pred_region
        // Predicated region
        $region33: #{ma_layer_forward.1} parent=31 // pred_check
          %p193 = pneg %p46
        $region34: #{ma_layer_forward.1} parent=31 // pred_check_branch
          %195 = sbr.rel (%p193) target = $region36
        $region35: #{ma_layer_forward.1} parent=31 // pred_region
          %s196 = sand.u32 %s36, 1
          %s197 = sand.u32 %s36, 1
          %s198 = smul.addr %s197, 16
          %s199 = scalar_lea.vmem [#allocation3], %s198
          %s200 = smul.u32 2, %s19
          %s201 = smul.addr %s200, 2
          %s202 = sadd.s32 %s20, %s201
          %s203 = smul.addr %s202, 8
          %s204 = scalar_lea.vmem %s0, %s203
          // Predicated region
          $region37: #{ma_layer_forward.1} parent=35 // pred_check
            _
          $region38: #{ma_layer_forward.1} parent=35 // pred_check_branch
            %206 = sbr.rel (0) target = $region40
          $region39: #{ma_layer_forward.1} parent=35 // pred_region
            // Predicated region
            $region41: #{ma_layer_forward.1} parent=39 // pred_check
              _
            $region42: #{ma_layer_forward.1} parent=39 // pred_check_branch
              %208 = sbr.rel (0) target = $region44
            $region43: #{ma_layer_forward.1} parent=39 // pred_region
              // Predicated region
              $region56: #{ma_layer_forward.1} parent=43 // pred_check
                _
              $region57: #{ma_layer_forward.1} parent=43 // pred_check_branch
                %226 = sbr.rel (0) target = $region59
              $region58: #{ma_layer_forward.1} parent=43 // pred_region
                loop: start=0, step=1, limit=1
                $region60: #{ma_layer_forward.1} parent=58 // loop_pre_header
                  _
                $region61: #{ma_layer_forward.1} parent=58 // loop_header
                  %s228 = sphi 0, %s232
                  %p229 = scmp.ge.s32.totalorder %s228, 1
                  %s233 = sphi %s204, %s204
                  %s234 = sphi %s199, %s199
                $region62: #{ma_layer_forward.1} parent=58 // loop_header_branch
                  %231 = sbr.rel (%p229) target = $region66
                $region63: #{ma_layer_forward.1} parent=58 // loop_body
                  %v235 = vld [vmem:[%s233] sm:$0xff]
                  %236 = vst [vmem:[%s234] sm:$0xff] %v235
                  %v237 = vld [vmem:[%s233 + $0x10] sm:$0xff]
                  %238 = vst [vmem:[%s234 + $0x8] sm:$0xff] %v237
                $region64: #{ma_layer_forward.1} parent=58 // loop_footer
                  %s232 = sadd.s32 1, %s228
                $region65: #{ma_layer_forward.1} parent=58 // loop_footer_branch
                  %227 = sbr.rel target = $region61
                $region66: #{ma_layer_forward.1} parent=58 // loop_exit
                  _
              $region59: #{ma_layer_forward.1} parent=43 // pred_fallthru
                _
              // Predicated region
              $region67: #{ma_layer_forward.1} parent=43 // pred_check
                _
              $region68: #{ma_layer_forward.1} parent=43 // pred_check_branch
                %240 = sbr.rel target = $region70
              $region69: #{ma_layer_forward.1} parent=43 // pred_region
                _
              $region70: #{ma_layer_forward.1} parent=43 // pred_fallthru
                _
            $region44: #{ma_layer_forward.1} parent=39 // pred_fallthru
              _
            // Predicated region
            $region45: #{ma_layer_forward.1} parent=39 // pred_check
              _
            $region46: #{ma_layer_forward.1} parent=39 // pred_check_branch
              %210 = sbr.rel target = $region48
            $region47: #{ma_layer_forward.1} parent=39 // pred_region
              %s212 = ssub.s32 256, 1
              loop: start=0, step=1, limit=1
              $region49: #{ma_layer_forward.1} parent=47 // loop_pre_header
                _
              $region50: #{ma_layer_forward.1} parent=47 // loop_header
                %s214 = sphi 0, %s218
                %p215 = scmp.ge.s32.totalorder %s214, 1
                %s219 = sphi %s204, %s204
                %s220 = sphi %s199, %s199
              $region51: #{ma_layer_forward.1} parent=47 // loop_header_branch
                %217 = sbr.rel (%p215) target = $region55
              $region52: #{ma_layer_forward.1} parent=47 // loop_body
                %v221 = vld [vmem:[%s219] sm:%s212]
                %222 = vst [vmem:[%s220] sm:%s212] %v221
                %v223 = vld [vmem:[%s219 + $0x10] sm:%s212]
                %224 = vst [vmem:[%s220 + $0x8] sm:%s212] %v223
              $region53: #{ma_layer_forward.1} parent=47 // loop_footer
                %s218 = sadd.s32 1, %s214
              $region54: #{ma_layer_forward.1} parent=47 // loop_footer_branch
                %213 = sbr.rel target = $region50
              $region55: #{ma_layer_forward.1} parent=47 // loop_exit
                _
            $region48: #{ma_layer_forward.1} parent=39 // pred_fallthru
              _
          $region40: #{ma_layer_forward.1} parent=35 // pred_fallthru
            _
          %241 = vnop
        $region36: #{ma_layer_forward.1} parent=31 // pred_fallthru
          _
      $region32: #{ma_layer_forward.1} parent=5 // pred_fallthru
        _
      %p242 = scmp.le.s32.totalorder 1, %s12
      %p243 = scmp.lt.s32.totalorder %s12, 3
      %p244 = pnand %p242, %p243
      %p245 = pneg %p244
      // Predicated region
      $region71: #{ma_layer_forward.1} parent=5 // pred_check
        _
      $region72: #{ma_layer_forward.1} parent=5 // pred_check_branch
        %247 = sbr.rel (%p244) target = $region74
      $region73: #{ma_layer_forward.1} parent=5 // pred_region
        %s248 = ssub.s32 %s12, 1
        %s249 = sand.u32 %s39, 1
        %s250 = sand.u32 %s39, 1
        %s251 = smul.addr %s250, 16
        %s252 = scalar_lea.vmem [#allocation3], %s251
        // Predicated region
        $region75: #{ma_layer_forward.1} parent=73 // pred_check
          %p253 = pneg %p52
        $region76: #{ma_layer_forward.1} parent=73 // pred_check_branch
          %255 = sbr.rel (%p253) target = $region78
        $region77: #{ma_layer_forward.1} parent=73 // pred_region
          _
        $region78: #{ma_layer_forward.1} parent=73 // pred_fallthru
          _
        %s256 = sand.u32 %s39, 1
        %s257 = sand.u32 %s39, 1
        %s258 = smul.addr %s257, 16
        %s259 = scalar_lea.vmem [#allocation3], %s258
        %p260 = pneg %p52
        %p261 = pneg %p49
        %p262 = pneg %p73
        %p263 = pneg %p70
        %p264 = pneg %p94
        %p265 = pneg %p91
        %p266 = pneg %p115
        %p267 = pneg %p112
        %p268 = pneg %p136
        %p269 = pneg %p133
        %p270 = pneg %p162
        %p271 = pneg %p159
        %s272 = smul.u32 2, %s21
        %p273 = scmp.eq.s32.totalorder %s22, 0
        // Predicated region
        $region79: #{ma_layer_forward.1} parent=73 // pred_check
          %p274 = pneg %p273
        $region80: #{ma_layer_forward.1} parent=73 // pred_check_branch
          %276 = sbr.rel (%p274) target = $region82
        $region81: #{ma_layer_forward.1} parent=73 // pred_region
          %vm277 = vcmask 41984
          %278 = vst.msk [vmem:[#allocation2] sm:$0x3] %vm277, 0.0
        $region82: #{ma_layer_forward.1} parent=73 // pred_fallthru
          _
        %v279 = vld [vmem:[%s252] sm:$0x3f]
        %v280 = vld [vmem:[%s252 + $0x8] sm:$0x3f]
        %v281 = vld [vmem:[#allocation2] sm:$0x3]
        %vm282 = vcmask 1045504
        %v283 = vsel %vm282, %v279, 0.0
        %284 = vadd.xlane.f32.xlu0 %v283
        %v285 = vpop.xlane.xlu0 %284
        %v286 = vsel %vm282, %v280, 0.0
        %287 = vadd.xlane.f32.xlu0 %v286
        %v288 = vpop.xlane.xlu0 %287
        %v291 = vlaneseq
        %v292 = vand.u32 %v291, 127
        %v293 = vperm.slane %v285, %v292
        %v294 = vperm.slane %v288, %v292
        %vm295 = vcmask 1041409
        %v296 = vsel %vm295, %v294, %v293
        %v298 = vadd.f32 %v281, %v296
        %vm299 = vcmask 41984
        %300 = vst.msk [vmem:[#allocation2] sm:$0x3] %vm299, %v298
        %p301 = scmp.eq.s32.totalorder %s22, 1
        // Predicated region
        $region83: #{ma_layer_forward.1} parent=73 // pred_check
          %p302 = pneg %p301
        $region84: #{ma_layer_forward.1} parent=73 // pred_check_branch
          %304 = sbr.rel (%p302) target = $region86
        $region85: #{ma_layer_forward.1} parent=73 // pred_region
          %v305 = vld [vmem:[#allocation2] sm:$0x3]
          %v306 = vmul.f32 %v305, 0.00390625
          %v307 = vld [vmem:[%s1] sm:$0x3f]
          %v308 = vld [vmem:[%s2] sm:$0x1]
          %v310 = vperm.slane %v308, 0
          %vm312 = vcmask 48128
          %v314 = vsel %vm312, %v306, 0
          %v317 = vsel %vm282, %v307, 0
          %319 = vmatpush.msra.mxu0 0.0
          %320 = vmatpush.msra.mxu0 0.0
          %321 = vmatpush.msra.mxu0 0.0
          %322 = vmatpush.msra.mxu0 0.0
          %323 = vmatpush.msra.mxu0 0.0
          %324 = vmatpush.msra.mxu0 0.0
          %325 = vmatpush.msra.mxu0 0.0
          %326 = vmatpush.msra.mxu0 0.0
          %327 = vmatpush.msra.mxu0 0.0
          %328 = vmatpush.msra.mxu0 0.0
          %329 = vmatpush.msra.mxu0 0.0
          %330 = vmatpush.msra.mxu0 0.0
          %331 = vmatpush.msra.mxu0 0.0
          %332 = vmatpush.msra.mxu0 0.0
          %333 = vmatpush.msra.mxu0 0.0
          %334 = vmatpush.msra.mxu0 %v317
          %335 = vmatmul.f32.gmra.mxu0 %v314
          %v336 = vpop.f32.mrf.mxu0
          %v337 = vadd.f32 %v310, %v336
          %338 = vdwg.mxu0
          %v339 = vmax.f32 %v337, 0.0
          %v340 = vld [vmem:[%s3] sm:$0xff]
          %v341 = vld [vmem:[%s3 + $0x8] sm:$0xf]
          %v342 = vld [vmem:[%s4] sm:$0x1]
          %v344 = vperm.slane %v342, 0
          %vm346 = vcmask 97280
          %v348 = vsel %vm346, %v339, 0
          %vm350 = vcmask 1043456
          %v352 = vsel %vm350, %v341, 0
          %354 = vmatpush.msra.mxu0 0.0
          %355 = vmatpush.msra.mxu0 0.0
          %356 = vmatpush.msra.mxu0 0.0
          %357 = vmatpush.msra.mxu0 0.0
          %358 = vmatpush.msra.mxu0 0.0
          %359 = vmatpush.msra.mxu0 0.0
          %360 = vmatpush.msra.mxu0 0.0
          %361 = vmatpush.msra.mxu0 0.0
          %362 = vmatpush.msra.mxu0 0.0
          %363 = vmatpush.msra.mxu0 0.0
          %364 = vmatpush.msra.mxu0 0.0
          %365 = vmatpush.msra.mxu0 0.0
          %366 = vmatpush.msra.mxu0 0.0
          %367 = vmatpush.msra.mxu0 0.0
          %368 = vmatpush.msra.mxu0 %v352
          %369 = vmatpush.msra.mxu0 %v340
          %370 = vmatmul.f32.gmra.mxu0 %v348
          %v371 = vpop.f32.mrf.mxu0
          %v372 = vadd.f32 %v344, %v371
          %373 = vdwg.mxu0
          %374 = vst.msk [vmem:[#allocation4] sm:$0x3] %vm299, %v372
        $region86: #{ma_layer_forward.1} parent=73 // pred_fallthru
          _
        // Predicated region
        $region87: #{ma_layer_forward.1} parent=73 // pred_check
          %p375 = pneg %p159
        $region88: #{ma_layer_forward.1} parent=73 // pred_check_branch
          %377 = sbr.rel (%p375) target = $region90
        $region89: #{ma_layer_forward.1} parent=73 // pred_region
          %379 = vsyncadd [#allocation5], 0
          %s380 = smul.addr %s21, 2
          %s381 = scalar_lea.hbm %s5, %s380
          %s383 = sshll.u32 [#allocation4], 4
          %s384 = int_to_ptr.vmem [resolvable:$true] %s383
          %s385 = sshll.u32 %s381, 4
          %s386 = int_to_ptr.hbm [resolvable:$true] %s385
          %388 = dma.vmem_to_hbm [thread:$0]  %s384, 32, %s386, [#allocation5]
        $region90: #{ma_layer_forward.1} parent=73 // pred_fallthru
          _
        // Predicated region
        $region91: #{ma_layer_forward.1} parent=73 // pred_check
          %p389 = pneg %p159
        $region92: #{ma_layer_forward.1} parent=73 // pred_check_branch
          %391 = sbr.rel (%p389) target = $region94
        $region93: #{ma_layer_forward.1} parent=73 // pred_region
          %393 = dma.done [#allocation5], 32
        $region94: #{ma_layer_forward.1} parent=73 // pred_fallthru
          _
      $region74: #{ma_layer_forward.1} parent=5 // pred_fallthru
        _
      %p394 = scmp.le.s32.totalorder 2, %s12
      // Predicated region
      $region95: #{ma_layer_forward.1} parent=5 // pred_check
        %p395 = pneg %p394
      $region96: #{ma_layer_forward.1} parent=5 // pred_check_branch
        %397 = sbr.rel (%p395) target = $region98
      $region97: #{ma_layer_forward.1} parent=5 // pred_region
        %s398 = ssub.s32 %s12, 2
      $region98: #{ma_layer_forward.1} parent=5 // pred_fallthru
        _
    $region6: #{ma_layer_forward.1} parent=1 // loop_footer
      %s16 = sadd.s32 1, %s12
    $region7: #{ma_layer_forward.1} parent=1 // loop_footer_branch
      %11 = sbr.rel target = $region3
    $region8: #{ma_layer_forward.1} parent=1 // loop_exit
      _
    %399 = vsyncpa [#allocation5], 1
    %s400 = scalar_lea.sflag [#allocation5], 1
    %401 = vsyncpa %s400, 1

</llo_original>
